<compile_context>
chip_gen: v5e
topology: v5e:2x2
jax: 0.10.0
libtpu: 0.0.40
codegen_flags: <defaults>
</compile_context>

<pallas_src>
import jax
import jax.numpy as jnp
from jax.experimental import pallas as pl
from jax.experimental.pallas import tpu as pltpu


def _pick_tile(dim, unit, cap):
    """Largest multiple of `unit` that divides `dim` and is <= cap.

    The wrapper pads `dim` to a multiple of `unit`, so a valid tile of at
    least `unit` always exists -- no full-dimension fallback that could blow
    past the VMEM budget on awkward shapes.
    """
    best = unit
    t = unit
    limit = min(dim, max(cap, unit))
    while t <= limit:
        if dim % t == 0:
            best = t
        t += unit
    return best


def _make_kernel(tb, tc):
    n_row_blocks = tb // 8       # tb is a multiple of 8 by construction
    n_col_blocks = tc // 128     # tc is a multiple of 128 by construction

    def kernel(pred_ref, x_ref, w_ref, out_ref):
        # Upcast narrow dtypes on load; all math in f32 on the VPU.
        diff = pred_ref[...].astype(jnp.float32) - x_ref[...].astype(jnp.float32)
        # Weight is already pre-scaled by gamma in the wrapper; (TB, 1)
        # broadcasts along the lane axis.
        wsq = w_ref[...] * (diff * diff)                    # (TB, TC) f32

        # Stage 1: (TB, TC) -> (8, TC).  Tile-aligned static slices summed
        # with pure vreg-wise VPU adds (no XLU cross-lane reduce).
        s1 = wsq[0:8, :]
        for r in range(1, n_row_blocks):
            s1 = s1 + wsq[r * 8:(r + 1) * 8, :]

        # Stage 2: (8, TC) -> (8, 128).  Again tile-aligned VPU adds.
        acc = s1[:, 0:128]
        for c in range(1, n_col_blocks):
            acc = acc + s1[:, c * 128:(c + 1) * 128]

        # One unmasked full-block store per grid step; no accumulator carry,
        # no init phase, both grid axes fully parallel (v7x megacore).
        out_ref[...] = acc

    return kernel


def weibull_twin_dae_loss(pred, x, mapped_y, loss_type, gamma,
                          *, row_tile_cap=512, col_tile_cap=4096):
    """Pallas implementation of WeibullTwinDAELoss.forward."""
    if loss_type not in ("negative", "positive"):
        raise ValueError("WeibullTwinDAELoss forward type error")

    B, T, D = pred.shape
    N = T * D
    gamma_f = float(gamma)

    # Pre-scaled per-row weight, computed once in the wrapper (B-sized op).
    y = mapped_y.reshape(B).astype(jnp.float32)
    if loss_type == "negative":
        w = (1.0 - y) * gamma_f
    else:
        w = y * gamma_f
    w = w.reshape(B, 1)

    # Lane-dense layout: fold (T, D) onto the 128-lane axis.  For default
    # row-major HBM layouts this reshape is a bitcast (no copy).
    # TODO(synk): if profiling ever shows a relayout copy here, flatten
    # (T, D) upstream where pred/x are produced instead.
    pred2 = pred.reshape(B, N)
    x2 = x.reshape(B, N)

    itemsize = jnp.dtype(pred.dtype).itemsize
    sub_unit = max(8, 32 // itemsize)              # 8 f32, 16 bf16, 32 int8/fp8
    row_cap = max(sub_unit, (row_tile_cap // sub_unit) * sub_unit)
    col_cap = max(128, col_tile_cap * (4 // itemsize))  # byte-constant blocks

    # Pad to (sublane unit, 128) multiples so tiling is always legal.
    # Padded rows get weight 0 and padded columns have diff == 0, so padding
    # contributes nothing to the sum.
    pad_b = (-B) % sub_unit
    pad_n = (-N) % 128
    if pad_b or pad_n:
        pred2 = jnp.pad(pred2, ((0, pad_b), (0, pad_n)))
        x2 = jnp.pad(x2, ((0, pad_b), (0, pad_n)))
        w = jnp.pad(w, ((0, pad_b), (0, 0)))
    Bp, Np = B + pad_b, N + pad_n

    TB = _pick_tile(Bp, sub_unit, row_cap)
    TC = _pick_tile(Np, 128, col_cap)
    GR = Bp // TB
    GC = Np // TC

    kernel = _make_kernel(TB, TC)

    cost = pl.CostEstimate(
        flops=4 * Bp * Np,  # sub, square, weight-mul, reduce-add
        transcendentals=0,
        bytes_accessed=2 * Bp * Np * itemsize + 4 * Bp + GR * GC * 8 * 128 * 4,
    )

    partials = pl.pallas_call(
        kernel,
        out_shape=jax.ShapeDtypeStruct((GR * 8, GC * 128), jnp.float32),
        grid=(GR, GC),
        in_specs=[
            pl.BlockSpec((TB, TC), lambda i, j: (i, j)),
            pl.BlockSpec((TB, TC), lambda i, j: (i, j)),
            pl.BlockSpec((TB, 1), lambda i, j: (i, 0)),
        ],
        out_specs=pl.BlockSpec((8, 128), lambda i, j: (i, j)),
        compiler_params=pltpu.CompilerParams(
            dimension_semantics=("parallel", "parallel"),
            vmem_limit_bytes=48 * 1024 * 1024,
        ),
        cost_estimate=cost,
    )(pred2, x2, w)

    # Tiny cross-block reduce + the 1/(T*D) "mean(dim=2)" scale.
    return jnp.sum(partials) * (1.0 / (T * D))


def _reference(pred, x, mapped_y, loss_type, gamma):
    """Pure-JAX reference mirroring the PyTorch code (f32 math)."""
    pf = pred.astype(jnp.float32)
    xf = x.astype(jnp.float32)
    loss = ((pf - xf) ** 2).mean(axis=2)                 # (B, T)
    if loss_type == "negative":
        wv = ((1.0 - mapped_y) * gamma).reshape(-1, 1)
    else:
        wv = (mapped_y * gamma).reshape(-1, 1)
    return (wv * loss).sum(axis=0).mean()


if __name__ == "__main__":
    # The module's only parameter is gamma (cfg['model__gamma']).
    gamma = 2.0

    key = jax.random.PRNGKey(0)
    k_pred, k_x, k_y = jax.random.split(key, 3)

    B, T, D = 4, 8, 32  # (batch, seq, hidden)
    pred = jax.random.normal(k_pred, (B, T, D), dtype=jnp.float32)
    x = jax.random.normal(k_x, (B, T, D), dtype=jnp.float32)
    mapped_y = jax.random.uniform(k_y, (B,), dtype=jnp.float32)

    ok = True
    for loss_type in ("negative", "positive"):
        out = jax.block_until_ready(
            weibull_twin_dae_loss(pred, x, mapped_y, loss_type, gamma))
        ref = _reference(pred, x, mapped_y, loss_type, gamma)
        if not jnp.allclose(out, ref, rtol=1e-5, atol=1e-5):
            ok = False

    if ok:
        print("KERNEL_OK")
</pallas_src>

<mosaic_0001>
module attributes {stable_mosaic.version = 11 : i64} {
  func.func @kernel(%arg0: i32, %arg1: i32, %arg2: memref<8x256xf32, #tpu.memory_space<vmem>>, %arg3: memref<8x256xf32, #tpu.memory_space<vmem>>, %arg4: memref<8x1xf32, #tpu.memory_space<vmem>>, %arg5: memref<8x128xf32, #tpu.memory_space<vmem>>) attributes {dimension_semantics = [#tpu.dimension_semantics<parallel>, #tpu.dimension_semantics<parallel>], iteration_bounds = array<i64: 1, 1>, scalar_prefetch = 0 : i64, scratch_operands = 0 : i64, tpu.core_type = #tpu.core_type<tc>, window_params = [{transform_indices = @transform_0, window_bounds = array<i64: 8, 256>}, {transform_indices = @transform_1, window_bounds = array<i64: 8, 256>}, {transform_indices = @transform_2, window_bounds = array<i64: 8, 1>}, {transform_indices = @transform_3, window_bounds = array<i64: 8, 128>}]} {
    %c0 = arith.constant 0 : index
    %c0_0 = arith.constant 0 : index
    %0 = vector.load %arg2[%c0, %c0_0] : memref<8x256xf32, #tpu.memory_space<vmem>>, vector<8x256xf32>
    %c0_1 = arith.constant 0 : index
    %c0_2 = arith.constant 0 : index
    %1 = vector.load %arg3[%c0_1, %c0_2] : memref<8x256xf32, #tpu.memory_space<vmem>>, vector<8x256xf32>
    %2 = arith.subf %0, %1 : vector<8x256xf32>
    %c0_3 = arith.constant 0 : index
    %c0_4 = arith.constant 0 : index
    %3 = vector.load %arg4[%c0_3, %c0_4] : memref<8x1xf32, #tpu.memory_space<vmem>>, vector<8x1xf32>
    %4 = arith.mulf %2, %2 : vector<8x256xf32>
    %5 = vector.broadcast %3 : vector<8x1xf32> to vector<8x256xf32>
    %6 = arith.mulf %5, %4 : vector<8x256xf32>
    %7 = vector.extract_strided_slice %6 {offsets = [0, 0], sizes = [8, 128], strides = [1, 1]} : vector<8x256xf32> to vector<8x128xf32>
    %8 = vector.extract_strided_slice %6 {offsets = [0, 128], sizes = [8, 128], strides = [1, 1]} : vector<8x256xf32> to vector<8x128xf32>
    %9 = arith.addf %7, %8 : vector<8x128xf32>
    %c0_5 = arith.constant 0 : index
    %c0_6 = arith.constant 0 : index
    %10 = vector.load %arg5[%c0_5, %c0_6] : memref<8x128xf32, #tpu.memory_space<vmem>>, vector<8x128xf32>
    tpu.vector_store %arg5[%c0_5, %c0_6], %9 {strides = array<i32>} : memref<8x128xf32, #tpu.memory_space<vmem>>, vector<8x128xf32>,
    return
  }
  func.func @transform_0(%arg0: i32, %arg1: i32) -> (i32, i32) {
    %c0_i32 = arith.constant 0 : i32
    return %arg0, %arg1 : i32, i32
  }
  func.func @transform_1(%arg0: i32, %arg1: i32) -> (i32, i32) {
    %c0_i32 = arith.constant 0 : i32
    return %arg0, %arg1 : i32, i32
  }
  func.func @transform_2(%arg0: i32, %arg1: i32) -> (i32, i32) {
    %c0_i32 = arith.constant 0 : i32
    %c0_i32_0 = arith.constant 0 : i32
    return %arg0, %c0_i32 : i32, i32
  }
  func.func @transform_3(%arg0: i32, %arg1: i32) -> (i32, i32) {
    %c0_i32 = arith.constant 0 : i32
    return %arg0, %arg1 : i32, i32
  }
}

</mosaic_0001>

<llo_original>
// kernel: tpu_custom_call.1
$region0: #{tpu_custom_call.1}
  #allocation0 [shape = 'u32[]', space=smem, size = 0x4, offset = 0x4, fixed_abs, tag = 'smem constant byte address 0x4 - core index']
  #allocation1 [shape = 'u32[72,128]{1,0:T(1,128)}', space=vmem, size = 0x9000, scoped, tag = 'internal scratch']
  %s0 = inlined_call_operand.hbm [shape: f32[8,256], index: 0, kind: input, shape index: {}]
  %s1 = inlined_call_operand.hbm [shape: f32[8,256], index: 1, kind: input, shape index: {}]
  %s2 = inlined_call_operand.vmem [shape: f32[8,1], index: 2, kind: input, shape index: {}]
  %s3 = inlined_call_operand.hbm [shape: f32[8,128], index: 3, kind: output, shape index: {}]
  %s4 = sld [smem:[#allocation0]]
  $region30: #{tpu_custom_call.1} parent=0
    _
  %s6 = ssub.s32 1, %s4
  %s7 = scalar_select 0, %s6, %s4
  $region1: #{tpu_custom_call.1} parent=0
    #allocation2 [shape = 'u8[8192]{0}', space=vmem, size = 0x2000, scoped, tag = 'input window, operand 0, single buffered']
    #allocation3 [shape = 's32[1]{0}', space=sflag, size = 0x4, scoped, tag = 'scoped memory for tpu_custom_call.1']
    #allocation4 [shape = 's32[1]{0}', space=sflag, size = 0x4, scoped, tag = 'scoped memory for tpu_custom_call.1']
    #allocation5 [shape = 'u8[8192]{0}', space=vmem, size = 0x2000, scoped, tag = 'input window, operand 1, single buffered']
    #allocation6 [shape = 's32[1]{0}', space=sflag, size = 0x4, scoped, tag = 'scoped memory for tpu_custom_call.1']
    #allocation7 [shape = 'u8[4096]{0}', space=vmem, size = 0x1000, scoped, tag = 'output window, operand 0, single buffered']
    %8 = vsyncpa [#allocation3], 0
    %9 = vsyncpa [#allocation6], 0
    %10 = vsyncpa [#allocation4], 0
    // Predicated region
    $region2: #{tpu_custom_call.1} parent=1 // pred_check
      _
    $region3: #{tpu_custom_call.1} parent=1 // pred_check_branch
      %12 = sbr.rel (0) target = $region5
    $region4: #{tpu_custom_call.1} parent=1 // pred_region
      %14 = vsyncadd [#allocation3], 0
      %s16 = sshll.u32 %s0, 4
      %s17 = int_to_ptr.hbm [resolvable:$true] %s16
      %s18 = sshll.u32 [#allocation2], 4
      %s19 = int_to_ptr.vmem [resolvable:$true] %s18
      %21 = dma.hbm_to_vmem [thread:$0]  %s17, 256, %s19, [#allocation3]
    $region5: #{tpu_custom_call.1} parent=1 // pred_fallthru
      _
    // Predicated region
    $region6: #{tpu_custom_call.1} parent=1 // pred_check
      _
    $region7: #{tpu_custom_call.1} parent=1 // pred_check_branch
      %23 = sbr.rel (0) target = $region9
    $region8: #{tpu_custom_call.1} parent=1 // pred_region
      %25 = vsyncadd [#allocation6], 0
      %s27 = sshll.u32 %s1, 4
      %s28 = int_to_ptr.hbm [resolvable:$true] %s27
      %s29 = sshll.u32 [#allocation5], 4
      %s30 = int_to_ptr.vmem [resolvable:$true] %s29
      %32 = dma.hbm_to_vmem [thread:$0]  %s28, 256, %s30, [#allocation6]
    $region9: #{tpu_custom_call.1} parent=1 // pred_fallthru
      _
    // Predicated region
    $region10: #{tpu_custom_call.1} parent=1 // pred_check
      _
    $region11: #{tpu_custom_call.1} parent=1 // pred_check_branch
      %34 = sbr.rel (0) target = $region13
    $region12: #{tpu_custom_call.1} parent=1 // pred_region
      _
    $region13: #{tpu_custom_call.1} parent=1 // pred_fallthru
      _
    // Predicated region
    $region14: #{tpu_custom_call.1} parent=1 // pred_check
      _
    $region15: #{tpu_custom_call.1} parent=1 // pred_check_branch
      %36 = sbr.rel (0) target = $region17
    $region16: #{tpu_custom_call.1} parent=1 // pred_region
      %38 = dma.done [#allocation3], 256
    $region17: #{tpu_custom_call.1} parent=1 // pred_fallthru
      _
    // Predicated region
    $region18: #{tpu_custom_call.1} parent=1 // pred_check
      _
    $region19: #{tpu_custom_call.1} parent=1 // pred_check_branch
      %40 = sbr.rel (0) target = $region21
    $region20: #{tpu_custom_call.1} parent=1 // pred_region
      %42 = dma.done [#allocation6], 256
    $region21: #{tpu_custom_call.1} parent=1 // pred_fallthru
      _
    %v43 = vld [vmem:[#allocation2] sm:$0xff]
    %v44 = vld [vmem:[#allocation2 + $0x8] sm:$0xff]
    %v45 = vld [vmem:[#allocation5] sm:$0xff]
    %v46 = vld [vmem:[#allocation5 + $0x8] sm:$0xff]
    %v47 = vsub.f32 %v43, %v45
    %v48 = vsub.f32 %v44, %v46
    %v49 = vld [vmem:[%s2] sm:$0xff]
    %v50 = vmul.f32 %v47, %v47
    %v51 = vmul.f32 %v48, %v48
    %53 = vset.pattern.permute.xlu0 0
    %54 = vperm.xlu0 %53, %v49
    %v55 = vpop.permute.xlu0 %54
    %v57 = vmul.f32 %v55, %v50
    %v58 = vmul.f32 %v55, %v51
    %v59 = vadd.f32 %v57, %v58
    %60 = vst [vmem:[#allocation7] sm:$0xff] %v59
    // Predicated region
    $region22: #{tpu_custom_call.1} parent=1 // pred_check
      _
    $region23: #{tpu_custom_call.1} parent=1 // pred_check_branch
      %62 = sbr.rel (0) target = $region25
    $region24: #{tpu_custom_call.1} parent=1 // pred_region
      %64 = vsyncadd [#allocation4], 0
      %s66 = sshll.u32 [#allocation7], 4
      %s67 = int_to_ptr.vmem [resolvable:$true] %s66
      %s68 = sshll.u32 %s3, 4
      %s69 = int_to_ptr.hbm [resolvable:$true] %s68
      %71 = dma.vmem_to_hbm [thread:$0]  %s67, 128, %s69, [#allocation4]
    $region25: #{tpu_custom_call.1} parent=1 // pred_fallthru
      _
    // Predicated region
    $region26: #{tpu_custom_call.1} parent=1 // pred_check
      _
    $region27: #{tpu_custom_call.1} parent=1 // pred_check_branch
      %73 = sbr.rel (0) target = $region29
    $region28: #{tpu_custom_call.1} parent=1 // pred_region
      %75 = dma.done [#allocation4], 128
    $region29: #{tpu_custom_call.1} parent=1 // pred_fallthru
      _
    %76 = vsyncpa [#allocation3], 1
    %77 = vsyncpa [#allocation6], 1
    %78 = vsyncpa [#allocation4], 1

</llo_original>
